<compile_context>
chip_gen: v7x
topology: tpu7x:2x2x1
jax: 0.10.0
libtpu: 0.0.40
codegen_flags: <defaults>
</compile_context>

<pallas_src>
import jax
import jax.numpy as jnp
from jax.experimental import pallas as pl
from jax.experimental.pallas import tpu as pltpu

IN_FEATURES = 10
OUT_FEATURES = 1
LANE = 128  # TPU vreg lane width


def linear_sigmoid_kernel(xt_ref, w_ref, b_ref, o_ref):
    # xt_ref: (IN_FEATURES, TILE_B) VMEM, input dtype -- batch on the lane axis
    # w_ref:  (IN_FEATURES, 1)      VMEM, f32 weight column (lane-broadcast)
    # b_ref:  (1,)                  SMEM, f32 bias scalar
    # o_ref:  (1, TILE_B)           VMEM, lane-dense output tile
    x = xt_ref[...].astype(jnp.float32)                 # cast rides the VPU
    # broadcast-multiply + sublane reduce: ~2 vld + 2 vmul per 128 rows,
    # accumulation pushed onto the otherwise-idle XLU.
    z = jnp.sum(x * w_ref[...], axis=0, keepdims=True) + b_ref[0]
    # sigmoid(z) = 0.5*tanh(z/2) + 0.5 : one EUP op, no VALU divide.
    o_ref[...] = (0.5 * jnp.tanh(0.5 * z) + 0.5).astype(o_ref.dtype)


def _pick_tile(batch, tile_cap):
    """Big blocks (amortize ~0.35us/step, hit HBM roofline) but keep >=4 blocks
    when the batch allows it so v7x's two TensorCores both stay fed."""
    if batch <= LANE:
        return batch                                   # single full-extent block
    tile_cap = max(LANE, (tile_cap // LANE) * LANE)    # keep a multiple of 128
    quarter = (batch // 4) // LANE * LANE
    return max(LANE, min(tile_cap, quarter if quarter else LANE))


def simple_model_forward(x, weight, bias, *, tile_b=65536):
    """x: (B, 10); weight: (1, 10) torch layout; bias: (1,). Returns (B, 1)."""
    B, in_f = x.shape
    assert in_f == IN_FEATURES and weight.shape == (OUT_FEATURES, IN_FEATURES)

    tile = _pick_tile(B, tile_b)
    n_blocks = pl.cdiv(B, tile)

    # Single layout copy: batch onto the lane axis. No padding anywhere; the
    # partial trailing block is handled by Pallas OOB read/write clipping.
    # (Perf note: a producer that already emits feature-major (10, B)
    # activations makes this the truly minimal-traffic path.)
    x_t = x.T                                           # (IN_FEATURES, B)
    w_col = weight.astype(jnp.float32).T                # (IN_FEATURES, 1)
    b_flat = bias.astype(jnp.float32).reshape(-1)       # (1,)

    out_t = pl.pallas_call(
        linear_sigmoid_kernel,
        out_shape=jax.ShapeDtypeStruct((OUT_FEATURES, B), x.dtype),
        grid=(n_blocks,),
        in_specs=[
            pl.BlockSpec((IN_FEATURES, tile), lambda i: (0, i)),
            pl.BlockSpec((IN_FEATURES, OUT_FEATURES), lambda i: (0, 0)),
            pl.BlockSpec(memory_space=pltpu.MemorySpace.SMEM),   # bias scalar
        ],
        out_specs=pl.BlockSpec((OUT_FEATURES, tile), lambda i: (0, i)),
        compiler_params=pltpu.CompilerParams(
            dimension_semantics=("parallel",)),  # v7x: shard batch tiles over TCs
    )(x_t, w_col, b_flat)

    # (1, B) -> (B, 1): contiguous row-major reshape, no data movement.
    return out_t.reshape(B, OUT_FEATURES)


if __name__ == "__main__":
    key = jax.random.PRNGKey(0)
    k_x, k_w, k_b = jax.random.split(key, 3)

    B = 8
    x = jax.random.normal(k_x, (B, IN_FEATURES), dtype=jnp.float32)

    # torch.nn.Linear-style init: U(-1/sqrt(fan_in), 1/sqrt(fan_in))
    bound = 1.0 / (IN_FEATURES ** 0.5)
    weight = jax.random.uniform(k_w, (OUT_FEATURES, IN_FEATURES),
                                minval=-bound, maxval=bound, dtype=jnp.float32)
    bias = jax.random.uniform(k_b, (OUT_FEATURES,),
                              minval=-bound, maxval=bound, dtype=jnp.float32)

    out = jax.block_until_ready(simple_model_forward(x, weight, bias))
    ref = jax.nn.sigmoid(x @ weight.T + bias)
    assert out.shape == (B, OUT_FEATURES)
    assert jnp.allclose(out, ref, atol=1e-5), "mismatch vs reference (B=8)"

    # Exercise the multi-tile path with a partial trailing block
    # (grid > 1, B % tile != 0, no padding anywhere).
    B2 = 1000
    x2 = jax.random.normal(jax.random.PRNGKey(1), (B2, IN_FEATURES),
                           dtype=jnp.float32)
    out2 = jax.block_until_ready(simple_model_forward(x2, weight, bias))
    ref2 = jax.nn.sigmoid(x2 @ weight.T + bias)
    assert out2.shape == (B2, OUT_FEATURES)
    assert jnp.allclose(out2, ref2, atol=1e-5), "mismatch vs reference (B=1000)"

    print("KERNEL_OK")
</pallas_src>

<mosaic_0001>
module attributes {stable_mosaic.version = 11 : i64} {
  func.func @linear_sigmoid_kernel(%arg0: i32, %arg1: memref<10x8xf32, #tpu.memory_space<vmem>>, %arg2: memref<10x1xf32, #tpu.memory_space<vmem>>, %arg3: memref<1xf32, #tpu.memory_space<smem>>, %arg4: memref<1x8xf32, #tpu.memory_space<vmem>>) attributes {dimension_semantics = [#tpu.dimension_semantics<parallel>], iteration_bounds = array<i64: 1>, scalar_prefetch = 0 : i64, scratch_operands = 0 : i64, tpu.core_type = #tpu.core_type<tc>, window_params = [{transform_indices = @transform_0, window_bounds = array<i64: 10, 8>}, {pipeline_mode = #tpu.pipeline_mode<synchronous>, transform_indices = @transform_1, window_bounds = array<i64: 10, 1>}, {transform_indices = @transform_2, window_bounds = array<i64: 1>}, {transform_indices = @transform_3, window_bounds = array<i64: 1, 8>}]} {
    %c0 = arith.constant 0 : index
    %c0_0 = arith.constant 0 : index
    %0 = vector.load %arg1[%c0, %c0_0] : memref<10x8xf32, #tpu.memory_space<vmem>>, vector<10x8xf32>
    %c0_1 = arith.constant 0 : index
    %c0_2 = arith.constant 0 : index
    %1 = vector.load %arg2[%c0_1, %c0_2] : memref<10x1xf32, #tpu.memory_space<vmem>>, vector<10x1xf32>
    %2 = vector.broadcast %1 : vector<10x1xf32> to vector<10x8xf32>
    %3 = arith.mulf %0, %2 : vector<10x8xf32>
    %cst = arith.constant dense<0.000000e+00> : vector<8xf32>
    %4 = vector.multi_reduction <add>, %3, %cst [0] : vector<10x8xf32> to vector<8xf32>
    %5 = vector.shape_cast %4 : vector<8xf32> to vector<1x8xf32>
    %c0_3 = arith.constant 0 : index
    %6 = memref.load %arg3[%c0_3] : memref<1xf32, #tpu.memory_space<smem>>
    %7 = vector.broadcast %6 : f32 to vector<1x8xf32>
    %8 = arith.addf %5, %7 : vector<1x8xf32>
    %cst_4 = arith.constant 5.000000e-01 : f32
    %9 = vector.broadcast %cst_4 : f32 to vector<1x8xf32>
    %10 = arith.mulf %9, %8 : vector<1x8xf32>
    %11 = math.tanh %10 : vector<1x8xf32>
    %cst_5 = arith.constant 5.000000e-01 : f32
    %12 = vector.broadcast %cst_5 : f32 to vector<1x8xf32>
    %13 = arith.mulf %12, %11 : vector<1x8xf32>
    %cst_6 = arith.constant 5.000000e-01 : f32
    %14 = vector.broadcast %cst_6 : f32 to vector<1x8xf32>
    %15 = arith.addf %13, %14 : vector<1x8xf32>
    %c0_7 = arith.constant 0 : index
    %c0_8 = arith.constant 0 : index
    %16 = vector.load %arg4[%c0_7, %c0_8] : memref<1x8xf32, #tpu.memory_space<vmem>>, vector<1x8xf32>
    tpu.vector_store %arg4[%c0_7, %c0_8], %15 {strides = array<i32>} : memref<1x8xf32, #tpu.memory_space<vmem>>, vector<1x8xf32>,
    return
  }
  func.func @transform_0(%arg0: i32) -> (i32, i32) {
    %c0_i32 = arith.constant 0 : i32
    %c0_i32_0 = arith.constant 0 : i32
    return %c0_i32, %arg0 : i32, i32
  }
  func.func @transform_1(%arg0: i32) -> (i32, i32) {
    %c0_i32 = arith.constant 0 : i32
    %c0_i32_0 = arith.constant 0 : i32
    %c0_i32_1 = arith.constant 0 : i32
    return %c0_i32, %c0_i32_0 : i32, i32
  }
  func.func @transform_2(%arg0: i32) -> i32 {
    %c0_i32 = arith.constant 0 : i32
    %c0_i32_0 = arith.constant 0 : i32
    return %c0_i32 : i32
  }
  func.func @transform_3(%arg0: i32) -> (i32, i32) {
    %c0_i32 = arith.constant 0 : i32
    %c0_i32_0 = arith.constant 0 : i32
    return %c0_i32, %arg0 : i32, i32
  }
}

</mosaic_0001>

<llo_original>
// kernel: tpu_custom_call.1
$region0: #{tpu_custom_call.1}
  #allocation0 [shape = 'u32[]', space=smem, size = 0x4, offset = 0x4, fixed_abs, tag = 'smem constant byte address 0x4 - core index']
  #allocation1 [shape = 'u32[144,128]{1,0:T(1,128)}', space=vmem, size = 0x12000, scoped, tag = 'internal scratch']
  #allocation2 [shape = 'f32[1]{0:T(128)S(6)}', space=smem, size = 0x200, scoped, tag = 'scoped memory for tpu_custom_call.1']
  %s0 = inlined_call_operand.vmem [shape: f32[10,8], index: 0, kind: input, shape index: {}]
  %s1 = inlined_call_operand.vmem [shape: f32[10,1], index: 1, kind: input, shape index: {}]
  %s2 = inlined_call_operand.<no memory space> [shape: f32[1], index: 2, kind: input, shape index: {}]
  %s3 = inlined_call_operand.hbm [shape: f32[1,8], index: 3, kind: output, shape index: {}]
  %s4 = sld [smem:[#allocation0]]
  $region22: #{tpu_custom_call.1} parent=0
    _
  %s6 = ssub.s32 1, %s4
  %s7 = scalar_select 0, %s6, %s4
  %8 = sst [smem:[#allocation2]] %s2
  $region1: #{tpu_custom_call.1} parent=0
    #allocation3 [shape = 'u8[512]{0}', space=vmem, size = 0x400, scoped, tag = 'output window, operand 0, single buffered']
    #allocation4 [shape = 's32[1]{0}', space=sflag, size = 0x4, scoped, tag = 'scoped memory for tpu_custom_call.1']
    %9 = vsyncpa [#allocation4], 0
    // Predicated region
    $region2: #{tpu_custom_call.1} parent=1 // pred_check
      _
    $region3: #{tpu_custom_call.1} parent=1 // pred_check_branch
      %11 = sbr.rel (0) target = $region5
    $region4: #{tpu_custom_call.1} parent=1 // pred_region
      _
    $region5: #{tpu_custom_call.1} parent=1 // pred_fallthru
      _
    // Predicated region
    $region6: #{tpu_custom_call.1} parent=1 // pred_check
      _
    $region7: #{tpu_custom_call.1} parent=1 // pred_check_branch
      %13 = sbr.rel (0) target = $region9
    $region8: #{tpu_custom_call.1} parent=1 // pred_region
      _
    $region9: #{tpu_custom_call.1} parent=1 // pred_fallthru
      _
    // Predicated region
    $region10: #{tpu_custom_call.1} parent=1 // pred_check
      _
    $region11: #{tpu_custom_call.1} parent=1 // pred_check_branch
      %15 = sbr.rel (0) target = $region13
    $region12: #{tpu_custom_call.1} parent=1 // pred_region
      _
    $region13: #{tpu_custom_call.1} parent=1 // pred_fallthru
      _
    %v16 = vld [vmem:[%s0] sm:$0xff]
    %v17 = vld [vmem:[%s0 + $0x8] sm:$0x3]
    %v18 = vld [vmem:[%s1] sm:$0xff]
    %v19 = vld [vmem:[%s1 + $0x8] sm:$0x3]
    %21 = vset.pattern.permute.xlu0 0
    %22 = vperm.xlu0 %21, %v18
    %v23 = vpop.permute.xlu0 %22
    %26 = vset.pattern.permute.xlu0 0
    %27 = vperm.xlu0 %26, %v19
    %v28 = vpop.permute.xlu0 %27
    %v30 = vmul.f32 %v16, %v23
    %v31 = vmul.f32 %v17, %v28
    %vm32 = vcmask 64512
    %v33 = vsel %vm32, %v30, 0.0
    %vm34 = vcmask 58368
    %v35 = vsel %vm34, %v31, 0.0
    %v36 = vadd.f32 %v33, %v35
    %v37 = vrot.slane %v36, 4
    %v38 = vadd.f32 %v36, %v37
    %v39 = vrot.slane %v38, 2
    %v40 = vadd.f32 %v38, %v39
    %v41 = vrot.slane %v40, 1
    %v42 = vadd.f32 %v40, %v41
    %s43 = sld [smem:[#allocation2]]
    %v44 = vstv %s43
    %v45 = vadd.f32 %v42, %v44
    %v46 = vmul.f32 %v45, 0.5
    %v47 = vtanh.pop %v46
    %v48 = vmul.f32 %v47, 0.5
    %v49 = vadd.f32 %v48, 0.5
    %vm50 = vcmask 57344
    %51 = vst.msk [vmem:[#allocation3] sm:$0x1] %vm50, %v49
    // Predicated region
    $region14: #{tpu_custom_call.1} parent=1 // pred_check
      _
    $region15: #{tpu_custom_call.1} parent=1 // pred_check_branch
      %53 = sbr.rel (0) target = $region17
    $region16: #{tpu_custom_call.1} parent=1 // pred_region
      %s55 = ssub.s32 16, 16
      %56 = vsyncadd [#allocation4], %s55
      %s58 = sshll.u32 [#allocation3], 4
      %s59 = int_to_ptr.vmem [resolvable:$true] %s58
      %61 = dma.vmem_to_hbm [thread:$0]  %s59, 16, %s3, [#allocation4]
    $region17: #{tpu_custom_call.1} parent=1 // pred_fallthru
      _
    // Predicated region
    $region18: #{tpu_custom_call.1} parent=1 // pred_check
      _
    $region19: #{tpu_custom_call.1} parent=1 // pred_check_branch
      %63 = sbr.rel (0) target = $region21
    $region20: #{tpu_custom_call.1} parent=1 // pred_region
      %64 = dma.done [#allocation4], 16
    $region21: #{tpu_custom_call.1} parent=1 // pred_fallthru
      _
    %65 = vsyncpa [#allocation4], 1

</llo_original>
